<compile_context>
chip_gen: v7x
topology: tpu7x:2x2x1
jax: 0.10.0
libtpu: 0.0.40
codegen_flags: <defaults>
</compile_context>

<pallas_src>
import functools

import jax
import jax.numpy as jnp
from jax import lax
from jax.experimental import pallas as pl
from jax.experimental.pallas import tpu as pltpu

_VMEM_LIMIT = 48 * 1024 * 1024        # explicit scoped-VMEM limit (<= v7x 64 MiB)
_VMEM_TILE_BUDGET = 32 * 1024 * 1024  # budget used when picking tile sizes


def _round_up(x, m):
    return ((x + m - 1) // m) * m


def _row_min(dtype):
    # Minimum sublane tile for the dtype's packing (f32: 8, bf16: 16, int8: 32).
    return {4: 8, 2: 16, 1: 32}.get(jnp.dtype(dtype).itemsize, 8)


def _pad_rows(x, n_extra):
    if n_extra == 0:
        return x
    return jnp.pad(x, ((0, n_extra), (0, 0)))


# ----------------------------------------------------------------------------
# Linear MMD:  || mean(source, 0) - mean(target, 0) ||^2
# ----------------------------------------------------------------------------
def _colsum_kernel(x_ref, o_ref):
    # Output block index is constant -> the (1, d) output stays VMEM-resident
    # across the (arbitrary) row-tile axis and acts as the accumulator.
    @pl.when(pl.program_id(0) == 0)
    def _():
        o_ref[...] = jnp.zeros_like(o_ref)

    # Padding rows are zero, so they do not perturb the column sums.
    o_ref[...] += jnp.sum(x_ref[...].astype(jnp.float32), axis=0, keepdims=True)


def _linear_finalize_kernel(ssum_ref, tgt_ref, out_ref, tacc_ref, *, n_src, n_tgt):
    i = pl.program_id(0)

    @pl.when(i == 0)
    def _():
        tacc_ref[...] = jnp.zeros_like(tacc_ref)

    tacc_ref[...] += jnp.sum(tgt_ref[...].astype(jnp.float32), axis=0,
                             keepdims=True)

    @pl.when(i == pl.num_programs(0) - 1)
    def _():
        delta = (ssum_ref[...] / jnp.float32(n_src)
                 - tacc_ref[...] / jnp.float32(n_tgt))
        out_ref[0, 0] = jnp.sum(delta * delta)


def _pick_linear_tm(n_rows, d, dtype):
    itemsize = jnp.dtype(dtype).itemsize
    rmin = _row_min(dtype)
    tm = rmin
    for cand in (1024, 512, 256, 128, 64, 32):
        if cand % rmin:
            continue
        # double-buffered row slab must fit comfortably (v7x-safe)
        if 2 * cand * d * itemsize <= 24 * 1024 * 1024:
            tm = cand
            break
    return max(rmin, min(tm, _round_up(max(n_rows, 1), rmin)))


def _linear_mmd(source, target):
    n_src, d = source.shape
    n_tgt, _ = target.shape

    # Pad each input only to its OWN tile multiple (no zero traffic for the
    # smaller batch when the two batch sizes are imbalanced).
    tm_s = _pick_linear_tm(n_src, d, source.dtype)
    tm_t = _pick_linear_tm(n_tgt, d, target.dtype)
    src_p = _pad_rows(source, _round_up(n_src, tm_s) - n_src)
    tgt_p = _pad_rows(target, _round_up(n_tgt, tm_t) - n_tgt)

    ssum = pl.pallas_call(
        _colsum_kernel,
        out_shape=jax.ShapeDtypeStruct((1, d), jnp.float32),
        grid=(src_p.shape[0] // tm_s,),
        in_specs=[pl.BlockSpec((tm_s, d), lambda i: (i, 0))],
        out_specs=pl.BlockSpec((1, d), lambda i: (0, 0)),
        compiler_params=pltpu.CompilerParams(
            dimension_semantics=("arbitrary",),
            vmem_limit_bytes=_VMEM_LIMIT),
    )(src_p)

    out = pl.pallas_call(
        functools.partial(_linear_finalize_kernel, n_src=n_src, n_tgt=n_tgt),
        out_shape=jax.ShapeDtypeStruct((1, 1), jnp.float32),
        grid=(tgt_p.shape[0] // tm_t,),
        in_specs=[pl.BlockSpec((1, d), lambda i: (0, 0)),   # resident source sums
                  pl.BlockSpec((tm_t, d), lambda i: (i, 0))],
        out_specs=pl.BlockSpec(memory_space=pltpu.SMEM),
        scratch_shapes=[pltpu.VMEM((1, d), jnp.float32)],
        compiler_params=pltpu.CompilerParams(
            dimension_semantics=("arbitrary",),
            vmem_limit_bytes=_VMEM_LIMIT),
    )(ssum, tgt_p)
    return out[0, 0]


# ----------------------------------------------------------------------------
# RBF MMD over the upper triangle of the (n, n) pairwise-kernel matrix.
# total_padded = concat([pad(source), pad(target)]) keeps the source/target
# boundary tile-aligned; iota-based masks select valid / source / target rows.
# ----------------------------------------------------------------------------
def _rbf_mmd_kernel(i_tbl_ref, j_tbl_ref,            # scalar-prefetch tile table
                    row_ref, col_ref, rn_ref, cn_ref, ninv_ref,
                    out_ref, acc_ref, *,
                    n_src, n_tgt, n_src_pad, kernel_mul, kernel_num, gram_dtype):
    t = pl.program_id(0)
    i = i_tbl_ref[t]
    j = j_tbl_ref[t]

    @pl.when(t == 0)
    def _():
        for k in range(4):
            acc_ref[k] = jnp.float32(0.0)

    bt = row_ref.shape[0]

    row = row_ref[...]
    col = col_ref[...]
    if gram_dtype is not None:
        row = row.astype(gram_dtype)
        col = col.astype(gram_dtype)

    # Pairwise squared distances via ||x||^2 + ||y||^2 - 2 x.y ; the squared
    # row norms were precomputed in the wrapper (rn: (bt,1), cn: (1,bt)).
    gram = lax.dot_general(row, col, (((1,), (1,)), ((), ())),
                           preferred_element_type=jnp.float32)       # (bt, bt)
    l2 = jnp.maximum(rn_ref[...] + cn_ref[...] - 2.0 * gram, 0.0)

    # Multi-bandwidth kernel sum.  ninv_ref[k] = -1 / bandwidth_list[k] was
    # computed in the wrapper (closed-form bandwidth -> no pass over the grid).
    if kernel_num > 1 and float(kernel_mul) == 2.0:
        # One EUP exp at the widest bandwidth; narrower terms by repeated
        # squaring on the VPU: exp(-l2/(b*2^k))^2 = exp(-l2/(b*2^(k-1))).
        term = jnp.exp(l2 * ninv_ref[kernel_num - 1])
        ksum = term
        for _ in range(kernel_num - 1):
            term = term * term
            ksum = ksum + term
    else:
        ksum = jnp.exp(l2 * ninv_ref[0])
        for k in range(1, kernel_num):
            ksum = ksum + jnp.exp(l2 * ninv_ref[k])

    # Block sums via an MXU mask contraction instead of four masked full-tile
    # VPU/XLU reductions: partial[:, 0] = sum over source cols,
    # partial[:, 1] = sum over target cols (padding cols masked out).
    col_idx = j * bt + lax.broadcasted_iota(jnp.int32, (bt, 2), 0)
    sel = lax.broadcasted_iota(jnp.int32, (bt, 2), 1)
    c_src = col_idx < n_src
    c_tgt = (col_idx >= n_src_pad) & (col_idx < n_src_pad + n_tgt)
    cmask = jnp.where(sel == 0, c_src, c_tgt).astype(jnp.float32)     # (bt, 2)
    partial = lax.dot_general(ksum, cmask, (((1,), (0,)), ((), ())),
                              preferred_element_type=jnp.float32)     # (bt, 2)

    row_idx = i * bt + lax.broadcasted_iota(jnp.int32, (bt, 1), 0)
    r_src = (row_idx < n_src).astype(jnp.float32)                     # (bt, 1)
    r_tgt = ((row_idx >= n_src_pad) &
             (row_idx < n_src_pad + n_tgt)).astype(jnp.float32)

    src_rows_all = jnp.sum(r_src * partial)          # xx + xy
    tgt_rows_all = jnp.sum(r_tgt * partial)          # yx + yy
    xx = jnp.sum(r_src * partial[:, :1])
    yx = jnp.sum(r_tgt * partial[:, :1])
    xy = src_rows_all - xx
    yy = tgt_rows_all - yx

    # Triangle grid (j >= i): an off-diagonal tile also stands in for its
    # mirror (j, i); by symmetry xx/yy double and xy <-> yx swap.
    is_diag = i == j
    acc_ref[0] += jnp.where(is_diag, xx, xx + xx)
    acc_ref[1] += jnp.where(is_diag, yy, yy + yy)
    acc_ref[2] += jnp.where(is_diag, xy, xy + yx)
    acc_ref[3] += jnp.where(is_diag, yx, yx + xy)

    @pl.when(t == pl.num_programs(0) - 1)
    def _():
        out_ref[0, 0] = (acc_ref[0] / jnp.float32(n_src * n_src)
                         + acc_ref[1] / jnp.float32(n_tgt * n_tgt)
                         - acc_ref[2] / jnp.float32(n_src * n_tgt)
                         - acc_ref[3] / jnp.float32(n_src * n_tgt))


def _pick_rbf_bt(d, itemsize, n_max):
    # Largest multiple-of-128 row tile whose double-buffered slabs plus the
    # (bt, bt) f32 tile temporaries stay inside a v7x-safe VMEM budget.
    bt = 128
    for cand in (1024, 512, 256, 128):
        if cand > 512 and d > 128:
            continue                     # giant tiles only in the small-d regime
        vmem = 4 * cand * d * itemsize + 6 * cand * cand * 4
        if vmem <= _VMEM_TILE_BUDGET:
            bt = cand
            break
    return min(bt, _round_up(max(n_max, 1), 128))


def _rbf_mmd(source, target, kernel_mul, kernel_num, fix_sigma, gram_dtype):
    n_src, d = source.shape
    n_tgt, _ = target.shape
    n_total = n_src + n_tgt
    itemsize = jnp.dtype(source.dtype).itemsize
    kernel_num = int(kernel_num)
    assert kernel_num >= 1

    # --- bandwidth in closed form (O(N*D) wrapper work; replaces the old
    #     whole-grid pass over the pairwise-distance matrix) ---
    if fix_sigma:
        bandwidth = jnp.float32(fix_sigma)
    else:
        src32 = source.astype(jnp.float32)
        tgt32 = target.astype(jnp.float32)
        sum_sq = jnp.sum(src32 * src32) + jnp.sum(tgt32 * tgt32)
        col_sum = jnp.sum(src32, axis=0) + jnp.sum(tgt32, axis=0)
        l2_sum = 2.0 * n_total * sum_sq - 2.0 * jnp.dot(col_sum, col_sum)
        bandwidth = l2_sum / jnp.float32(n_total * n_total - n_total)
    bandwidth = bandwidth / jnp.float32(kernel_mul ** (kernel_num // 2))
    neg_inv = jnp.stack(
        [-1.0 / (bandwidth * jnp.float32(kernel_mul ** k))
         for k in range(kernel_num)]).astype(jnp.float32)

    # --- padded [source | target] slab with a tile-aligned boundary ---
    bt = _pick_rbf_bt(d, itemsize, max(n_src, n_tgt))
    ns_pad = _round_up(n_src, bt)
    nt_pad = _round_up(n_tgt, bt)
    total_pad = jnp.concatenate(
        [_pad_rows(source, ns_pad - n_src),
         _pad_rows(target, nt_pad - n_tgt)], axis=0)
    n_pad = ns_pad + nt_pad
    nb = n_pad // bt

    # Precomputed squared row norms (streamed as (bt,1) / (1,bt) blocks).
    norms = jnp.sum(jnp.square(total_pad.astype(jnp.float32)), axis=1)
    row_norms = norms.reshape(n_pad, 1)
    col_norms = norms.reshape(1, n_pad)

    # Upper-triangle tile table (j >= i), row-major so consecutive grid steps
    # reuse the resident row slab (no re-DMA when the block index repeats).
    i_list, j_list = [], []
    for ii in range(nb):
        for jj in range(ii, nb):
            i_list.append(ii)
            j_list.append(jj)
    i_tbl = jnp.asarray(i_list, dtype=jnp.int32)
    j_tbl = jnp.asarray(j_list, dtype=jnp.int32)
    n_tiles = len(i_list)

    kern = functools.partial(
        _rbf_mmd_kernel,
        n_src=n_src, n_tgt=n_tgt, n_src_pad=ns_pad,
        kernel_mul=float(kernel_mul), kernel_num=kernel_num,
        gram_dtype=gram_dtype)

    out = pl.pallas_call(
        kern,
        out_shape=jax.ShapeDtypeStruct((1, 1), jnp.float32),
        grid_spec=pltpu.PrefetchScalarGridSpec(
            num_scalar_prefetch=2,
            grid=(n_tiles,),
            in_specs=[
                pl.BlockSpec((bt, d), lambda t, it, jt: (it[t], 0)),   # row slab
                pl.BlockSpec((bt, d), lambda t, it, jt: (jt[t], 0)),   # col slab
                pl.BlockSpec((bt, 1), lambda t, it, jt: (it[t], 0)),   # row norms
                pl.BlockSpec((1, bt), lambda t, it, jt: (0, jt[t])),   # col norms
                pl.BlockSpec(memory_space=pltpu.SMEM),                 # -1/bandwidths
            ],
            out_specs=pl.BlockSpec(memory_space=pltpu.SMEM),
            scratch_shapes=[pltpu.SMEM((4,), jnp.float32)],            # xx,yy,xy,yx
        ),
        compiler_params=pltpu.CompilerParams(
            dimension_semantics=("arbitrary",),
            vmem_limit_bytes=_VMEM_LIMIT),
    )(i_tbl, j_tbl, total_pad, total_pad, row_norms, col_norms, neg_inv)
    return out[0, 0]


# ----------------------------------------------------------------------------
# Wrapper (mirrors MMDLoss.forward)
# ----------------------------------------------------------------------------
def mmd_loss(source, target, *, kernel_type="linear", kernel_mul=2.0,
             kernel_num=1, fix_sigma=None, gram_dtype=None):
    source = jnp.asarray(source)
    target = jnp.asarray(target)
    assert source.ndim == 2 and target.ndim == 2
    assert source.shape[1] == target.shape[1], "feature dims must match"

    if kernel_type == "linear":
        return _linear_mmd(source, target)
    elif kernel_type == "rbf":
        return _rbf_mmd(source, target, kernel_mul, kernel_num, fix_sigma,
                        gram_dtype)
    else:
        raise ValueError(f"unknown kernel_type {kernel_type}")


# ----------------------------------------------------------------------------
# Pure-JAX references (correctness check only)
# ----------------------------------------------------------------------------
def _ref_linear(source, target):
    delta = (source.astype(jnp.float32).mean(0)
             - target.astype(jnp.float32).mean(0))
    return jnp.dot(delta, delta)


def _ref_rbf(source, target, kernel_mul=2.0, kernel_num=1, fix_sigma=None):
    total = jnp.concatenate([source, target], axis=0).astype(jnp.float32)
    n = total.shape[0]
    l2 = jnp.sum((total[None, :, :] - total[:, None, :]) ** 2, axis=-1)
    bw = fix_sigma if fix_sigma else jnp.sum(l2) / (n * n - n)
    bw = bw / (kernel_mul ** (kernel_num // 2))
    kern = sum(jnp.exp(-l2 / (bw * kernel_mul ** i)) for i in range(kernel_num))
    b = source.shape[0]
    return (kern[:b, :b].mean() + kern[b:, b:].mean()
            - kern[:b, b:].mean() - kern[b:, :b].mean())


if __name__ == "__main__":
    key = jax.random.PRNGKey(0)
    k1, k2, k3, k4, k5, k6, k7, k8 = jax.random.split(key, 8)

    # small shapes consistent with the module: batch ~ 8, hidden = 32
    src = jax.random.normal(k1, (8, 32), dtype=jnp.float32)
    tgt = jax.random.normal(k2, (8, 32), dtype=jnp.float32)
    # ragged batch sizes to exercise padding / validity masks
    src2 = jax.random.normal(k3, (7, 32), dtype=jnp.float32)
    tgt2 = jax.random.normal(k4, (9, 32), dtype=jnp.float32)
    # imbalanced / multi-tile linear case
    src3 = jax.random.normal(k5, (1300, 64), dtype=jnp.float32)
    tgt3 = jax.random.normal(k6, (140, 64), dtype=jnp.float32)
    # multi-tile rbf case (triangle grid with diagonal + off-diagonal tiles)
    src4 = jax.random.normal(k7, (150, 32), dtype=jnp.float32)
    tgt4 = jax.random.normal(k8, (170, 32), dtype=jnp.float32)

    # default path of MMDLoss.forward: kernel_type='linear'
    for s, t in ((src, tgt), (src2, tgt2), (src3, tgt3)):
        loss = mmd_loss(s, t, kernel_type="linear")
        jax.block_until_ready(loss)
        ref = _ref_linear(s, t)
        assert jnp.allclose(loss, ref, rtol=1e-4, atol=1e-5), (loss, ref)

    # rbf path, module defaults (kernel_mul=2.0, kernel_num=1, fix_sigma=None)
    loss = mmd_loss(src, tgt, kernel_type="rbf", kernel_mul=2.0, kernel_num=1)
    jax.block_until_ready(loss)
    ref = _ref_rbf(src, tgt, kernel_mul=2.0, kernel_num=1)
    assert jnp.allclose(loss, ref, rtol=1e-4, atol=1e-4), (loss, ref)

    # rbf, common DSAN config (kernel_num=5) -> repeated-squaring path, ragged
    loss = mmd_loss(src2, tgt2, kernel_type="rbf", kernel_mul=2.0, kernel_num=5)
    jax.block_until_ready(loss)
    ref = _ref_rbf(src2, tgt2, kernel_mul=2.0, kernel_num=5)
    assert jnp.allclose(loss, ref, rtol=1e-4, atol=1e-4), (loss, ref)

    # rbf with fixed sigma
    loss = mmd_loss(src, tgt, kernel_type="rbf", kernel_mul=2.0, kernel_num=2,
                    fix_sigma=1.0)
    jax.block_until_ready(loss)
    ref = _ref_rbf(src, tgt, kernel_mul=2.0, kernel_num=2, fix_sigma=1.0)
    assert jnp.allclose(loss, ref, rtol=1e-4, atol=1e-4), (loss, ref)

    # rbf multi-tile (triangle grid, symmetry doubling, masks with padding)
    loss = mmd_loss(src4, tgt4, kernel_type="rbf", kernel_mul=2.0, kernel_num=5)
    jax.block_until_ready(loss)
    ref = _ref_rbf(src4, tgt4, kernel_mul=2.0, kernel_num=5)
    assert jnp.allclose(loss, ref, rtol=1e-4, atol=1e-4), (loss, ref)

    # rbf with bf16 gram (MXU-native path for f32 inputs, looser tolerance)
    loss_bf = mmd_loss(src4, tgt4, kernel_type="rbf", kernel_mul=2.0,
                       kernel_num=5, gram_dtype=jnp.bfloat16)
    jax.block_until_ready(loss_bf)
    assert jnp.allclose(loss_bf, loss, rtol=5e-2, atol=1e-2), (loss_bf, loss)

    print("KERNEL_OK")
</pallas_src>

<mosaic_0001>
module attributes {stable_mosaic.version = 11 : i64} {
  func.func @_colsum_kernel(%arg0: i32, %arg1: memref<8x32xf32, #tpu.memory_space<vmem>>, %arg2: memref<1x32xf32, #tpu.memory_space<vmem>>) attributes {dimension_semantics = [#tpu.dimension_semantics<arbitrary>], iteration_bounds = array<i64: 1>, scalar_prefetch = 0 : i64, scratch_operands = 0 : i64, tpu.core_type = #tpu.core_type<tc>, window_params = [{transform_indices = @transform_0, window_bounds = array<i64: 8, 32>}, {pipeline_mode = #tpu.pipeline_mode<synchronous>, transform_indices = @transform_1, window_bounds = array<i64: 1, 32>}]} {
    %c0_i32 = arith.constant 0 : i32
    %0 = arith.cmpi eq, %arg0, %c0_i32 : i32
    %1 = arith.extui %0 : i1 to i32
    %c0_i32_0 = arith.constant 0 : i32
    %2 = arith.cmpi ne, %1, %c0_i32_0 : i32
    scf.if %2 {
      %cst_6 = arith.constant 0.000000e+00 : f32
      %9 = vector.broadcast %cst_6 : f32 to vector<1x32xf32>
      %c0_7 = arith.constant 0 : index
      %c0_8 = arith.constant 0 : index
      %10 = vector.load %arg2[%c0_7, %c0_8] : memref<1x32xf32, #tpu.memory_space<vmem>>, vector<1x32xf32>
      tpu.vector_store %arg2[%c0_7, %c0_8], %9 {strides = array<i32>} : memref<1x32xf32, #tpu.memory_space<vmem>>, vector<1x32xf32>,
    } else {
    }
    %c0 = arith.constant 0 : index
    %c0_1 = arith.constant 0 : index
    %3 = vector.load %arg2[%c0, %c0_1] : memref<1x32xf32, #tpu.memory_space<vmem>>, vector<1x32xf32>
    %c0_2 = arith.constant 0 : index
    %c0_3 = arith.constant 0 : index
    %4 = vector.load %arg1[%c0_2, %c0_3] : memref<8x32xf32, #tpu.memory_space<vmem>>, vector<8x32xf32>
    %cst = arith.constant dense<0.000000e+00> : vector<32xf32>
    %5 = vector.multi_reduction <add>, %4, %cst [0] : vector<8x32xf32> to vector<32xf32>
    %6 = vector.shape_cast %5 : vector<32xf32> to vector<1x32xf32>
    %7 = arith.addf %3, %6 : vector<1x32xf32>
    %c0_4 = arith.constant 0 : index
    %c0_5 = arith.constant 0 : index
    %8 = vector.load %arg2[%c0_4, %c0_5] : memref<1x32xf32, #tpu.memory_space<vmem>>, vector<1x32xf32>
    tpu.vector_store %arg2[%c0_4, %c0_5], %7 {strides = array<i32>} : memref<1x32xf32, #tpu.memory_space<vmem>>, vector<1x32xf32>,
    return
  }
  func.func @transform_0(%arg0: i32) -> (i32, i32) {
    %c0_i32 = arith.constant 0 : i32
    %c0_i32_0 = arith.constant 0 : i32
    return %arg0, %c0_i32 : i32, i32
  }
  func.func @transform_1(%arg0: i32) -> (i32, i32) {
    %c0_i32 = arith.constant 0 : i32
    %c0_i32_0 = arith.constant 0 : i32
    %c0_i32_1 = arith.constant 0 : i32
    return %c0_i32, %c0_i32_0 : i32, i32
  }
}

</mosaic_0001>

<llo_original>
// kernel: tpu_custom_call.1
$region0: #{tpu_custom_call.1}
  #allocation0 [shape = 'u32[]', space=smem, size = 0x4, offset = 0x4, fixed_abs, tag = 'smem constant byte address 0x4 - core index']
  #allocation1 [shape = 'u32[144,128]{1,0:T(1,128)}', space=vmem, size = 0x12000, scoped, tag = 'internal scratch']
  %s0 = inlined_call_operand.hbm [shape: f32[8,32], index: 0, kind: input, shape index: {}]
  %s1 = inlined_call_operand.hbm [shape: f32[1,32], index: 1, kind: output, shape index: {}]
  %s2 = sld [smem:[#allocation0]]
  $region22: #{tpu_custom_call.1} parent=0
    _
  %s4 = ssub.s32 1, %s2
  %s5 = scalar_select 0, %s4, %s2
  $region1: #{tpu_custom_call.1} parent=0
    #allocation2 [shape = 'u8[4096]{0}', space=vmem, size = 0x1000, scoped, tag = 'input window, operand 0, single buffered']
    #allocation3 [shape = 's32[1]{0}', space=sflag, size = 0x4, scoped, tag = 'scoped memory for tpu_custom_call.1']
    #allocation4 [shape = 's32[1]{0}', space=sflag, size = 0x4, scoped, tag = 'scoped memory for tpu_custom_call.1']
    #allocation5 [shape = 'u8[512]{0}', space=vmem, size = 0x400, scoped, tag = 'output window, operand 0, single buffered']
    %6 = vsyncpa [#allocation3], 0
    %7 = vsyncpa [#allocation4], 0
    // Predicated region
    $region2: #{tpu_custom_call.1} parent=1 // pred_check
      _
    $region3: #{tpu_custom_call.1} parent=1 // pred_check_branch
      %9 = sbr.rel (0) target = $region5
    $region4: #{tpu_custom_call.1} parent=1 // pred_region
      %s11 = ssub.s32 128, 128
      %12 = vsyncadd [#allocation3], %s11
      %s14 = sshll.u32 [#allocation2], 4
      %s15 = int_to_ptr.vmem [resolvable:$true] %s14
      %17 = dma.hbm_to_vmem [thread:$0]  %s0, 128, %s15, [#allocation3]
    $region5: #{tpu_custom_call.1} parent=1 // pred_fallthru
      _
    // Predicated region
    $region6: #{tpu_custom_call.1} parent=1 // pred_check
      _
    $region7: #{tpu_custom_call.1} parent=1 // pred_check_branch
      %19 = sbr.rel (0) target = $region9
    $region8: #{tpu_custom_call.1} parent=1 // pred_region
      %20 = dma.done [#allocation3], 128
    $region9: #{tpu_custom_call.1} parent=1 // pred_fallthru
      _
    %p21 = scmp.eq.s32.totalorder 0, 0
    // Predicated region
    $region10: #{tpu_custom_call.1} parent=1 // pred_check
      %p22 = pneg %p21
    $region11: #{tpu_custom_call.1} parent=1 // pred_check_branch
      %24 = sbr.rel (%p22) target = $region13
    $region12: #{tpu_custom_call.1} parent=1 // pred_region
      %vm25 = vcmask 253952
      %26 = vst.msk [vmem:[#allocation5] sm:$0x1] %vm25, 0.0
    $region13: #{tpu_custom_call.1} parent=1 // pred_fallthru
      _
    %v27 = vld [vmem:[#allocation5] sm:$0x1]
    %v28 = vld [vmem:[#allocation2] sm:$0xff]
    %vm29 = vcmask 261120
    %v30 = vsel %vm29, %v28, 0.0
    %v31 = vrot.slane %v30, 4
    %v32 = vadd.f32 %v30, %v31
    %v33 = vrot.slane %v32, 2
    %v34 = vadd.f32 %v32, %v33
    %v35 = vrot.slane %v34, 1
    %v36 = vadd.f32 %v34, %v35
    %v37 = vadd.f32 %v27, %v36
    %vm38 = vcmask 253952
    %39 = vst.msk [vmem:[#allocation5] sm:$0x1] %vm38, %v37
    // Predicated region
    $region14: #{tpu_custom_call.1} parent=1 // pred_check
      _
    $region15: #{tpu_custom_call.1} parent=1 // pred_check_branch
      %41 = sbr.rel (0) target = $region17
    $region16: #{tpu_custom_call.1} parent=1 // pred_region
      %s43 = ssub.s32 16, 16
      %44 = vsyncadd [#allocation4], %s43
      %s46 = sshll.u32 [#allocation5], 4
      %s47 = int_to_ptr.vmem [resolvable:$true] %s46
      %49 = dma.vmem_to_hbm [thread:$0]  %s47, 16, %s1, [#allocation4]
    $region17: #{tpu_custom_call.1} parent=1 // pred_fallthru
      _
    // Predicated region
    $region18: #{tpu_custom_call.1} parent=1 // pred_check
      _
    $region19: #{tpu_custom_call.1} parent=1 // pred_check_branch
      %51 = sbr.rel (0) target = $region21
    $region20: #{tpu_custom_call.1} parent=1 // pred_region
      %52 = dma.done [#allocation4], 16
    $region21: #{tpu_custom_call.1} parent=1 // pred_fallthru
      _
    %53 = vsyncpa [#allocation3], 1
    %54 = vsyncpa [#allocation4], 1

</llo_original>
